<compile_context>
chip_gen: v5e
topology: v5e:2x2
jax: 0.10.0
libtpu: 0.0.40
codegen_flags: <defaults>
</compile_context>

<pallas_src>
import functools

import jax
import jax.numpy as jnp
from jax import lax
from jax.experimental import pallas as pl
from jax.experimental.pallas import tpu as pltpu


def fused_rnn_kernel(x_ref, w1t_ref, b1_ref, wi3_ref, bi3_ref,
                     h0_ref, wh3_ref, bh3_ref,
                     out_ref, gates_ref):
    """One fused kernel: batched projections + serial GRU recurrence.

    Phase 1 (h-independent, all time steps batched):
        fc    = relu(x @ W1^T + b1)                       (S*B, H)
        gates = fc @ [W_ir|W_iz|W_in]^T + folded biases   (S*B, 3O) -> VMEM scratch
        (b_ir+b_hr and b_iz+b_hz are folded in; b_hn is NOT -- it must stay
         inside r * (W_hn h + b_hn) on the hidden side.)

    Phase 2 (serial recurrence, fully unrolled for small static S):
        g_h = h @ [W_hr|W_hz|W_hn]^T + [0|0|b_hn]         one MXU dot per step
        r, z, n via static lane slices; h' = (1-z)*n + z*h.
    """
    S, B, O = out_ref.shape

    # ---- Phase 1: batched, lane-dense (N = 3O) projections over all steps. --
    fc = jnp.dot(x_ref[...], w1t_ref[...], preferred_element_type=jnp.float32)
    fc = jnp.maximum(fc + b1_ref[...], 0.0)                        # (S*B, H)
    gates_ref[...] = (jnp.dot(fc, wi3_ref[...],
                              preferred_element_type=jnp.float32)
                      + bi3_ref[...])                              # (S*B, 3O)

    # ---- Phase 2: serial GRU recurrence (latency-bound). --------------------
    # Loop-invariant loads / broadcasts hoisted out of the time loop.
    w_hh3 = wh3_ref[...]                                           # (O, 3O)
    b_hh3 = jnp.broadcast_to(bh3_ref[...], (B, 3 * O))             # [0 | 0 | b_hn]
    h = h0_ref[...]                                                # (B, O) f32

    # S is small and static -> fully-unrolled loop (static slice starts, no
    # per-step grid / pipeline overhead).
    # TODO(synk): for S >~ 64 switch to lax.fori_loop(..., unroll=4-8) to bound
    # trace size / vreg live ranges.
    for t in range(S):
        g_i = gates_ref[pl.ds(t * B, B), :]                        # (B, 3O)
        g_h = jnp.dot(h, w_hh3,
                      preferred_element_type=jnp.float32) + b_hh3  # (B, 3O)
        r = jax.nn.sigmoid(g_i[:, 0 * O:1 * O] + g_h[:, 0 * O:1 * O])
        z = jax.nn.sigmoid(g_i[:, 1 * O:2 * O] + g_h[:, 1 * O:2 * O])
        n = jnp.tanh(g_i[:, 2 * O:3 * O] + r * g_h[:, 2 * O:3 * O])
        h = (1.0 - z) * n + z * h
        out_ref[t] = h               # resident VMEM block; 1 HBM writeback at end


def prepare_params(params, out_dim):
    """One-time parameter preparation (hoisted out of the hot forward call)."""
    O = out_dim
    w_ih, w_hh = params["w_ih"], params["w_hh"]          # (3O, H), (3O, O)
    b_ih, b_hh = params["b_ih"], params["b_hh"]          # (3O,),   (3O,)

    # Fused input-gate bias: b_ir+b_hr | b_iz+b_hz | b_in   (b_hn kept hidden-side)
    bi3 = jnp.concatenate([
        b_ih[0 * O:1 * O] + b_hh[0 * O:1 * O],
        b_ih[1 * O:2 * O] + b_hh[1 * O:2 * O],
        b_ih[2 * O:3 * O],
    ]).reshape(1, 3 * O)
    # Fused hidden-gate bias: 0 | 0 | b_hn
    zeros_o = jnp.zeros((O,), jnp.float32)
    bh3 = jnp.concatenate([zeros_o, zeros_o, b_hh[2 * O:3 * O]]).reshape(1, 3 * O)

    return {
        "w1t": params["w1"].T,                           # (IN, H)
        "b1": params["b1"].reshape(1, -1),               # (1, H)
        "wi3": w_ih.T,                                   # (H, 3O), gate order r|z|n
        "bi3": bi3,                                      # (1, 3O)
        "wh3": w_hh.T,                                   # (O, 3O)
        "bh3": bh3,                                      # (1, 3O)
    }


@jax.jit
def rnn_forward(x, h0, prepped):
    """x: (S, B, IN) f32, h0: (1, B, O) f32. Returns (out (S,B,O), hidden (1,B,O))."""
    S, B, IN = x.shape
    O = h0.shape[-1]
    H = prepped["w1t"].shape[1]

    x2d = x.reshape(S * B, IN)                           # time-major rows

    c2 = lambda i: (0, 0)
    c3 = lambda i: (0, 0, 0)

    out = pl.pallas_call(
        fused_rnn_kernel,
        out_shape=jax.ShapeDtypeStruct((S, B, O), jnp.float32),
        grid=(1,),
        in_specs=[
            pl.BlockSpec((S * B, IN), c2),               # x (flattened over time)
            pl.BlockSpec((IN, H), c2),                   # W1^T
            pl.BlockSpec((1, H), c2),                    # b1
            pl.BlockSpec((H, 3 * O), c2),                # [W_ir|W_iz|W_in]^T
            pl.BlockSpec((1, 3 * O), c2),                # folded input-gate biases
            pl.BlockSpec((B, O), c2),                    # h0
            pl.BlockSpec((O, 3 * O), c2),                # [W_hr|W_hz|W_hn]^T
            pl.BlockSpec((1, 3 * O), c2),                # [0|0|b_hn]
        ],
        out_specs=pl.BlockSpec((S, B, O), c3),
        scratch_shapes=[pltpu.VMEM((S * B, 3 * O), jnp.float32)],   # gate scratch
        # TODO(synk): for large S*B, tile phase 1 over a "parallel" row axis
        # (megacore on v7x) and size blocks for the 64 MiB v7x VMEM budget.
    )(x2d, prepped["w1t"], prepped["b1"], prepped["wi3"], prepped["bi3"],
      h0[0], prepped["wh3"], prepped["bh3"])

    hidden = out[-1:]                                    # 1-layer GRU: h_final == out[-1]
    return out, hidden


def rnn_reference(x, h0, params):
    """Pure-JAX reference matching PyTorch semantics."""
    w1, b1 = params["w1"], params["b1"]
    w_ih, w_hh = params["w_ih"], params["w_hh"]
    b_ih, b_hh = params["b_ih"], params["b_hh"]
    O = h0.shape[-1]

    fc = jax.nn.relu(jnp.einsum("sbi,hi->sbh", x, w1) + b1)

    def step(h, x_t):
        gi = x_t @ w_ih.T + b_ih
        gh = h @ w_hh.T + b_hh
        r = jax.nn.sigmoid(gi[:, :O] + gh[:, :O])
        z = jax.nn.sigmoid(gi[:, O:2 * O] + gh[:, O:2 * O])
        n = jnp.tanh(gi[:, 2 * O:] + r * gh[:, 2 * O:])
        h_new = (1.0 - z) * n + z * h
        return h_new, h_new

    h_last, outs = lax.scan(step, h0[0], fc)
    return outs, h_last[None]


def init_params(key, input_dim, hidden_dim, out_dim):
    ks = jax.random.split(key, 6)
    lim1 = 1.0 / jnp.sqrt(input_dim)
    limg = 1.0 / jnp.sqrt(out_dim)
    return {
        "w1": jax.random.uniform(ks[0], (hidden_dim, input_dim), jnp.float32, -lim1, lim1),
        "b1": jax.random.uniform(ks[1], (hidden_dim,), jnp.float32, -lim1, lim1),
        "w_ih": jax.random.uniform(ks[2], (3 * out_dim, hidden_dim), jnp.float32, -limg, limg),
        "w_hh": jax.random.uniform(ks[3], (3 * out_dim, out_dim), jnp.float32, -limg, limg),
        "b_ih": jax.random.uniform(ks[4], (3 * out_dim,), jnp.float32, -limg, limg),
        "b_hh": jax.random.uniform(ks[5], (3 * out_dim,), jnp.float32, -limg, limg),
    }


if __name__ == "__main__":
    SEQ, BATCH, INPUT_DIM, HIDDEN_DIM, OUT_DIM = 8, 4, 16, 32, 32

    key = jax.random.PRNGKey(0)
    kx, kh, kp = jax.random.split(key, 3)
    x = jax.random.normal(kx, (SEQ, BATCH, INPUT_DIM), jnp.float32)
    h0 = jax.random.normal(kh, (1, BATCH, OUT_DIM), jnp.float32)
    params = init_params(kp, INPUT_DIM, HIDDEN_DIM, OUT_DIM)

    # One-time parameter preparation (hoisted glue; not in the hot call).
    prepped = prepare_params(params, OUT_DIM)
    prepped = jax.tree_util.tree_map(jax.block_until_ready, prepped)

    out, hidden = rnn_forward(x, h0, prepped)
    jax.block_until_ready((out, hidden))

    out_ref, hidden_ref = rnn_reference(x, h0, params)
    assert out.shape == (SEQ, BATCH, OUT_DIM)
    assert hidden.shape == (1, BATCH, OUT_DIM)
    assert jnp.allclose(out, out_ref, atol=1e-4), "out mismatch vs reference"
    assert jnp.allclose(hidden, hidden_ref, atol=1e-4), "hidden mismatch vs reference"

    print("KERNEL_OK")
</pallas_src>

<mosaic_0001>
module attributes {stable_mosaic.version = 11 : i64} {
  func.func @fused_rnn_kernel(%arg0: i32, %arg1: memref<32x16xf32, #tpu.memory_space<vmem>>, %arg2: memref<16x32xf32, #tpu.memory_space<vmem>>, %arg3: memref<1x32xf32, #tpu.memory_space<vmem>>, %arg4: memref<32x96xf32, #tpu.memory_space<vmem>>, %arg5: memref<1x96xf32, #tpu.memory_space<vmem>>, %arg6: memref<4x32xf32, #tpu.memory_space<vmem>>, %arg7: memref<32x96xf32, #tpu.memory_space<vmem>>, %arg8: memref<1x96xf32, #tpu.memory_space<vmem>>, %arg9: memref<8x4x32xf32, #tpu.memory_space<vmem>>, %arg10: memref<32x96xf32, #tpu.memory_space<vmem>>) attributes {dimension_semantics = [#tpu.dimension_semantics<arbitrary>], iteration_bounds = array<i64: 1>, scalar_prefetch = 0 : i64, scratch_operands = 1 : i64, tpu.core_type = #tpu.core_type<tc>, window_params = [{pipeline_mode = #tpu.pipeline_mode<synchronous>, transform_indices = @transform_0, window_bounds = array<i64: 32, 16>}, {pipeline_mode = #tpu.pipeline_mode<synchronous>, transform_indices = @transform_1, window_bounds = array<i64: 16, 32>}, {pipeline_mode = #tpu.pipeline_mode<synchronous>, transform_indices = @transform_2, window_bounds = array<i64: 1, 32>}, {pipeline_mode = #tpu.pipeline_mode<synchronous>, transform_indices = @transform_3, window_bounds = array<i64: 32, 96>}, {pipeline_mode = #tpu.pipeline_mode<synchronous>, transform_indices = @transform_4, window_bounds = array<i64: 1, 96>}, {pipeline_mode = #tpu.pipeline_mode<synchronous>, transform_indices = @transform_5, window_bounds = array<i64: 4, 32>}, {pipeline_mode = #tpu.pipeline_mode<synchronous>, transform_indices = @transform_6, window_bounds = array<i64: 32, 96>}, {pipeline_mode = #tpu.pipeline_mode<synchronous>, transform_indices = @transform_7, window_bounds = array<i64: 1, 96>}, {pipeline_mode = #tpu.pipeline_mode<synchronous>, transform_indices = @transform_8, window_bounds = array<i64: 8, 4, 32>}]} {
    %c0 = arith.constant 0 : index
    %c0_0 = arith.constant 0 : index
    %0 = vector.load %arg1[%c0, %c0_0] : memref<32x16xf32, #tpu.memory_space<vmem>>, vector<32x16xf32>
    %c0_1 = arith.constant 0 : index
    %c0_2 = arith.constant 0 : index
    %1 = vector.load %arg2[%c0_1, %c0_2] : memref<16x32xf32, #tpu.memory_space<vmem>>, vector<16x32xf32>
    %cst = arith.constant dense<0.000000e+00> : vector<32x32xf32>
    %2 = tpu.matmul %0, %1, %cst {dimension_numbers = #tpu.dot_dimension_numbers<[1], [0], [0], [1], [0, 0, 1, 1], [], []>} : vector<32x16xf32>, vector<16x32xf32>, vector<32x32xf32> -> vector<32x32xf32>
    %c0_3 = arith.constant 0 : index
    %c0_4 = arith.constant 0 : index
    %3 = vector.load %arg3[%c0_3, %c0_4] : memref<1x32xf32, #tpu.memory_space<vmem>>, vector<1x32xf32>
    %4 = vector.broadcast %3 : vector<1x32xf32> to vector<32x32xf32>
    %5 = arith.addf %2, %4 : vector<32x32xf32>
    %cst_5 = arith.constant 0.000000e+00 : f32
    %6 = vector.broadcast %cst_5 : f32 to vector<32x32xf32>
    %7 = arith.maximumf %5, %6 : vector<32x32xf32>
    %c0_6 = arith.constant 0 : index
    %c0_7 = arith.constant 0 : index
    %8 = vector.load %arg4[%c0_6, %c0_7] : memref<32x96xf32, #tpu.memory_space<vmem>>, vector<32x96xf32>
    %cst_8 = arith.constant dense<0.000000e+00> : vector<32x96xf32>
    %9 = tpu.matmul %7, %8, %cst_8 {dimension_numbers = #tpu.dot_dimension_numbers<[1], [0], [0], [1], [0, 0, 1, 1], [], []>} : vector<32x32xf32>, vector<32x96xf32>, vector<32x96xf32> -> vector<32x96xf32>
    %c0_9 = arith.constant 0 : index
    %c0_10 = arith.constant 0 : index
    %10 = vector.load %arg5[%c0_9, %c0_10] : memref<1x96xf32, #tpu.memory_space<vmem>>, vector<1x96xf32>
    %11 = vector.broadcast %10 : vector<1x96xf32> to vector<32x96xf32>
    %12 = arith.addf %9, %11 : vector<32x96xf32>
    %c0_11 = arith.constant 0 : index
    %c0_12 = arith.constant 0 : index
    %13 = vector.load %arg10[%c0_11, %c0_12] : memref<32x96xf32, #tpu.memory_space<vmem>>, vector<32x96xf32>
    tpu.vector_store %arg10[%c0_11, %c0_12], %12 {strides = array<i32>} : memref<32x96xf32, #tpu.memory_space<vmem>>, vector<32x96xf32>,
    %c0_13 = arith.constant 0 : index
    %c0_14 = arith.constant 0 : index
    %14 = vector.load %arg7[%c0_13, %c0_14] : memref<32x96xf32, #tpu.memory_space<vmem>>, vector<32x96xf32>
    %c0_15 = arith.constant 0 : index
    %c0_16 = arith.constant 0 : index
    %15 = vector.load %arg8[%c0_15, %c0_16] : memref<1x96xf32, #tpu.memory_space<vmem>>, vector<1x96xf32>
    %16 = vector.shape_cast %15 : vector<1x96xf32> to vector<1x96xf32>
    %17 = vector.broadcast %16 : vector<1x96xf32> to vector<4x96xf32>
    %c0_17 = arith.constant 0 : index
    %c0_18 = arith.constant 0 : index
    %18 = vector.load %arg6[%c0_17, %c0_18] : memref<4x32xf32, #tpu.memory_space<vmem>>, vector<4x32xf32>
    %c0_19 = arith.constant 0 : index
    %c0_20 = arith.constant 0 : index
    %19 = vector.load %arg10[%c0_19, %c0_20] : memref<32x96xf32, #tpu.memory_space<vmem>>, vector<4x96xf32>
    %cst_21 = arith.constant dense<0.000000e+00> : vector<4x96xf32>
    %20 = tpu.matmul %18, %14, %cst_21 {dimension_numbers = #tpu.dot_dimension_numbers<[1], [0], [0], [1], [0, 0, 1, 1], [], []>} : vector<4x32xf32>, vector<32x96xf32>, vector<4x96xf32> -> vector<4x96xf32>
    %21 = arith.addf %20, %17 : vector<4x96xf32>
    %22 = vector.extract_strided_slice %19 {offsets = [0, 0], sizes = [4, 32], strides = [1, 1]} : vector<4x96xf32> to vector<4x32xf32>
    %23 = vector.extract_strided_slice %21 {offsets = [0, 0], sizes = [4, 32], strides = [1, 1]} : vector<4x96xf32> to vector<4x32xf32>
    %24 = arith.addf %22, %23 : vector<4x32xf32>
    %25 = arith.negf %24 : vector<4x32xf32>
    %26 = math.exp %25 : vector<4x32xf32>
    %cst_22 = arith.constant 1.000000e+00 : f32
    %27 = vector.broadcast %cst_22 : f32 to vector<4x32xf32>
    %28 = arith.addf %27, %26 : vector<4x32xf32>
    %29 = arith.divf %27, %28 : vector<4x32xf32>
    %30 = vector.extract_strided_slice %19 {offsets = [0, 32], sizes = [4, 32], strides = [1, 1]} : vector<4x96xf32> to vector<4x32xf32>
    %31 = vector.extract_strided_slice %21 {offsets = [0, 32], sizes = [4, 32], strides = [1, 1]} : vector<4x96xf32> to vector<4x32xf32>
    %32 = arith.addf %30, %31 : vector<4x32xf32>
    %33 = arith.negf %32 : vector<4x32xf32>
    %34 = math.exp %33 : vector<4x32xf32>
    %cst_23 = arith.constant 1.000000e+00 : f32
    %35 = vector.broadcast %cst_23 : f32 to vector<4x32xf32>
    %36 = arith.addf %35, %34 : vector<4x32xf32>
    %37 = arith.divf %35, %36 : vector<4x32xf32>
    %38 = vector.extract_strided_slice %19 {offsets = [0, 64], sizes = [4, 32], strides = [1, 1]} : vector<4x96xf32> to vector<4x32xf32>
    %39 = vector.extract_strided_slice %21 {offsets = [0, 64], sizes = [4, 32], strides = [1, 1]} : vector<4x96xf32> to vector<4x32xf32>
    %40 = arith.mulf %29, %39 : vector<4x32xf32>
    %41 = arith.addf %38, %40 : vector<4x32xf32>
    %42 = math.tanh %41 : vector<4x32xf32>
    %cst_24 = arith.constant 1.000000e+00 : f32
    %43 = vector.broadcast %cst_24 : f32 to vector<4x32xf32>
    %44 = arith.subf %43, %37 : vector<4x32xf32>
    %45 = arith.mulf %44, %42 : vector<4x32xf32>
    %46 = arith.mulf %37, %18 : vector<4x32xf32>
    %47 = arith.addf %45, %46 : vector<4x32xf32>
    %c0_25 = arith.constant 0 : index
    %c0_26 = arith.constant 0 : index
    %c0_27 = arith.constant 0 : index
    %48 = vector.load %arg9[%c0_25, %c0_26, %c0_27] : memref<8x4x32xf32, #tpu.memory_space<vmem>>, vector<1x4x32xf32>
    %49 = vector.shape_cast %48 : vector<1x4x32xf32> to vector<4x32xf32>
    %50 = vector.shape_cast %47 : vector<4x32xf32> to vector<1x4x32xf32>
    tpu.vector_store %arg9[%c0_25, %c0_26, %c0_27], %50 {strides = array<i32>} : memref<8x4x32xf32, #tpu.memory_space<vmem>>, vector<1x4x32xf32>,
    %c4 = arith.constant 4 : index
    %c0_28 = arith.constant 0 : index
    %51 = vector.load %arg10[%c4, %c0_28] : memref<32x96xf32, #tpu.memory_space<vmem>>, vector<4x96xf32>
    %cst_29 = arith.constant dense<0.000000e+00> : vector<4x96xf32>
    %52 = tpu.matmul %47, %14, %cst_29 {dimension_numbers = #tpu.dot_dimension_numbers<[1], [0], [0], [1], [0, 0, 1, 1], [], []>} : vector<4x32xf32>, vector<32x96xf32>, vector<4x96xf32> -> vector<4x96xf32>
    %53 = arith.addf %52, %17 : vector<4x96xf32>
    %54 = vector.extract_strided_slice %51 {offsets = [0, 0], sizes = [4, 32], strides = [1, 1]} : vector<4x96xf32> to vector<4x32xf32>
    %55 = vector.extract_strided_slice %53 {offsets = [0, 0], sizes = [4, 32], strides = [1, 1]} : vector<4x96xf32> to vector<4x32xf32>
    %56 = arith.addf %54, %55 : vector<4x32xf32>
    %57 = arith.negf %56 : vector<4x32xf32>
    %58 = math.exp %57 : vector<4x32xf32>
    %cst_30 = arith.constant 1.000000e+00 : f32
    %59 = vector.broadcast %cst_30 : f32 to vector<4x32xf32>
    %60 = arith.addf %59, %58 : vector<4x32xf32>
    %61 = arith.divf %59, %60 : vector<4x32xf32>
    %62 = vector.extract_strided_slice %51 {offsets = [0, 32], sizes = [4, 32], strides = [1, 1]} : vector<4x96xf32> to vector<4x32xf32>
    %63 = vector.extract_strided_slice %53 {offsets = [0, 32], sizes = [4, 32], strides = [1, 1]} : vector<4x96xf32> to vector<4x32xf32>
    %64 = arith.addf %62, %63 : vector<4x32xf32>
    %65 = arith.negf %64 : vector<4x32xf32>
    %66 = math.exp %65 : vector<4x32xf32>
    %cst_31 = arith.constant 1.000000e+00 : f32
    %67 = vector.broadcast %cst_31 : f32 to vector<4x32xf32>
    %68 = arith.addf %67, %66 : vector<4x32xf32>
    %69 = arith.divf %67, %68 : vector<4x32xf32>
    %70 = vector.extract_strided_slice %51 {offsets = [0, 64], sizes = [4, 32], strides = [1, 1]} : vector<4x96xf32> to vector<4x32xf32>
    %71 = vector.extract_strided_slice %53 {offsets = [0, 64], sizes = [4, 32], strides = [1, 1]} : vector<4x96xf32> to vector<4x32xf32>
    %72 = arith.mulf %61, %71 : vector<4x32xf32>
    %73 = arith.addf %70, %72 : vector<4x32xf32>
    %74 = math.tanh %73 : vector<4x32xf32>
    %cst_32 = arith.constant 1.000000e+00 : f32
    %75 = vector.broadcast %cst_32 : f32 to vector<4x32xf32>
    %76 = arith.subf %75, %69 : vector<4x32xf32>
    %77 = arith.mulf %76, %74 : vector<4x32xf32>
    %78 = arith.mulf %69, %47 : vector<4x32xf32>
    %79 = arith.addf %77, %78 : vector<4x32xf32>
    %c1 = arith.constant 1 : index
    %c0_33 = arith.constant 0 : index
    %c0_34 = arith.constant 0 : index
    %80 = vector.load %arg9[%c1, %c0_33, %c0_34] : memref<8x4x32xf32, #tpu.memory_space<vmem>>, vector<1x4x32xf32>
    %81 = vector.shape_cast %80 : vector<1x4x32xf32> to vector<4x32xf32>
    %82 = vector.shape_cast %79 : vector<4x32xf32> to vector<1x4x32xf32>
    tpu.vector_store %arg9[%c1, %c0_33, %c0_34], %82 {strides = array<i32>} : memref<8x4x32xf32, #tpu.memory_space<vmem>>, vector<1x4x32xf32>,
    %c8 = arith.constant 8 : index
    %c0_35 = arith.constant 0 : index
    %83 = vector.load %arg10[%c8, %c0_35] : memref<32x96xf32, #tpu.memory_space<vmem>>, vector<4x96xf32>
    %cst_36 = arith.constant dense<0.000000e+00> : vector<4x96xf32>
    %84 = tpu.matmul %79, %14, %cst_36 {dimension_numbers = #tpu.dot_dimension_numbers<[1], [0], [0], [1], [0, 0, 1, 1], [], []>} : vector<4x32xf32>, vector<32x96xf32>, vector<4x96xf32> -> vector<4x96xf32>
    %85 = arith.addf %84, %17 : vector<4x96xf32>
    %86 = vector.extract_strided_slice %83 {offsets = [0, 0], sizes = [4, 32], strides = [1, 1]} : vector<4x96xf32> to vector<4x32xf32>
    %87 = vector.extract_strided_slice %85 {offsets = [0, 0], sizes = [4, 32], strides = [1, 1]} : vector<4x96xf32> to vector<4x32xf32>
    %88 = arith.addf %86, %87 : vector<4x32xf32>
    %89 = arith.negf %88 : vector<4x32xf32>
    %90 = math.exp %89 : vector<4x32xf32>
    %cst_37 = arith.constant 1.000000e+00 : f32
    %91 = vector.broadcast %cst_37 : f32 to vector<4x32xf32>
    %92 = arith.addf %91, %90 : vector<4x32xf32>
    %93 = arith.divf %91, %92 : vector<4x32xf32>
    %94 = vector.extract_strided_slice %83 {offsets = [0, 32], sizes = [4, 32], strides = [1, 1]} : vector<4x96xf32> to vector<4x32xf32>
    %95 = vector.extract_strided_slice %85 {offsets = [0, 32], sizes = [4, 32], strides = [1, 1]} : vector<4x96xf32> to vector<4x32xf32>
    %96 = arith.addf %94, %95 : vector<4x32xf32>
    %97 = arith.negf %96 : vector<4x32xf32>
    %98 = math.exp %97 : vector<4x32xf32>
    %cst_38 = arith.constant 1.000000e+00 : f32
    %99 = vector.broadcast %cst_38 : f32 to vector<4x32xf32>
    %100 = arith.addf %99, %98 : vector<4x32xf32>
    %101 = arith.divf %99, %100 : vector<4x32xf32>
    %102 = vector.extract_strided_slice %83 {offsets = [0, 64], sizes = [4, 32], strides = [1, 1]} : vector<4x96xf32> to vector<4x32xf32>
    %103 = vector.extract_strided_slice %85 {offsets = [0, 64], sizes = [4, 32], strides = [1, 1]} : vector<4x96xf32> to vector<4x32xf32>
    %104 = arith.mulf %93, %103 : vector<4x32xf32>
    %105 = arith.addf %102, %104 : vector<4x32xf32>
    %106 = math.tanh %105 : vector<4x32xf32>
    %cst_39 = arith.constant 1.000000e+00 : f32
    %107 = vector.broadcast %cst_39 : f32 to vector<4x32xf32>
    %108 = arith.subf %107, %101 : vector<4x32xf32>
    %109 = arith.mulf %108, %106 : vector<4x32xf32>
    %110 = arith.mulf %101, %79 : vector<4x32xf32>
    %111 = arith.addf %109, %110 : vector<4x32xf32>
    %c2 = arith.constant 2 : index
    %c0_40 = arith.constant 0 : index
    %c0_41 = arith.constant 0 : index
    %112 = vector.load %arg9[%c2, %c0_40, %c0_41] : memref<8x4x32xf32, #tpu.memory_space<vmem>>, vector<1x4x32xf32>
    %113 = vector.shape_cast %112 : vector<1x4x32xf32> to vector<4x32xf32>
    %114 = vector.shape_cast %111 : vector<4x32xf32> to vector<1x4x32xf32>
    tpu.vector_store %arg9[%c2, %c0_40, %c0_41], %114 {strides = array<i32>} : memref<8x4x32xf32, #tpu.memory_space<vmem>>, vector<1x4x32xf32>,
    %c12 = arith.constant 12 : index
    %c0_42 = arith.constant 0 : index
    %115 = vector.load %arg10[%c12, %c0_42] : memref<32x96xf32, #tpu.memory_space<vmem>>, vector<4x96xf32>
    %cst_43 = arith.constant dense<0.000000e+00> : vector<4x96xf32>
    %116 = tpu.matmul %111, %14, %cst_43 {dimension_numbers = #tpu.dot_dimension_numbers<[1], [0], [0], [1], [0, 0, 1, 1], [], []>} : vector<4x32xf32>, vector<32x96xf32>, vector<4x96xf32> -> vector<4x96xf32>
    %117 = arith.addf %116, %17 : vector<4x96xf32>
    %118 = vector.extract_strided_slice %115 {offsets = [0, 0], sizes = [4, 32], strides = [1, 1]} : vector<4x96xf32> to vector<4x32xf32>
    %119 = vector.extract_strided_slice %117 {offsets = [0, 0], sizes = [4, 32], strides = [1, 1]} : vector<4x96xf32> to vector<4x32xf32>
    %120 = arith.addf %118, %119 : vector<4x32xf32>
    %121 = arith.negf %120 : vector<4x32xf32>
    %122 = math.exp %121 : vector<4x32xf32>
    %cst_44 = arith.constant 1.000000e+00 : f32
    %123 = vector.broadcast %cst_44 : f32 to vector<4x32xf32>
    %124 = arith.addf %123, %122 : vector<4x32xf32>
    %125 = arith.divf %123, %124 : vector<4x32xf32>
    %126 = vector.extract_strided_slice %115 {offsets = [0, 32], sizes = [4, 32], strides = [1, 1]} : vector<4x96xf32> to vector<4x32xf32>
    %127 = vector.extract_strided_slice %117 {offsets = [0, 32], sizes = [4, 32], strides = [1, 1]} : vector<4x96xf32> to vector<4x32xf32>
    %128 = arith.addf %126, %127 : vector<4x32xf32>
    %129 = arith.negf %128 : vector<4x32xf32>
    %130 = math.exp %129 : vector<4x32xf32>
    %cst_45 = arith.constant 1.000000e+00 : f32
    %131 = vector.broadcast %cst_45 : f32 to vector<4x32xf32>
    %132 = arith.addf %131, %130 : vector<4x32xf32>
    %133 = arith.divf %131, %132 : vector<4x32xf32>
    %134 = vector.extract_strided_slice %115 {offsets = [0, 64], sizes = [4, 32], strides = [1, 1]} : vector<4x96xf32> to vector<4x32xf32>
    %135 = vector.extract_strided_slice %117 {offsets = [0, 64], sizes = [4, 32], strides = [1, 1]} : vector<4x96xf32> to vector<4x32xf32>
    %136 = arith.mulf %125, %135 : vector<4x32xf32>
    %137 = arith.addf %134, %136 : vector<4x32xf32>
    %138 = math.tanh %137 : vector<4x32xf32>
    %cst_46 = arith.constant 1.000000e+00 : f32
    %139 = vector.broadcast %cst_46 : f32 to vector<4x32xf32>
    %140 = arith.subf %139, %133 : vector<4x32xf32>
    %141 = arith.mulf %140, %138 : vector<4x32xf32>
    %142 = arith.mulf %133, %111 : vector<4x32xf32>
    %143 = arith.addf %141, %142 : vector<4x32xf32>
    %c3 = arith.constant 3 : index
    %c0_47 = arith.constant 0 : index
    %c0_48 = arith.constant 0 : index
    %144 = vector.load %arg9[%c3, %c0_47, %c0_48] : memref<8x4x32xf32, #tpu.memory_space<vmem>>, vector<1x4x32xf32>
    %145 = vector.shape_cast %144 : vector<1x4x32xf32> to vector<4x32xf32>
    %146 = vector.shape_cast %143 : vector<4x32xf32> to vector<1x4x32xf32>
    tpu.vector_store %arg9[%c3, %c0_47, %c0_48], %146 {strides = array<i32>} : memref<8x4x32xf32, #tpu.memory_space<vmem>>, vector<1x4x32xf32>,
    %c16 = arith.constant 16 : index
    %c0_49 = arith.constant 0 : index
    %147 = vector.load %arg10[%c16, %c0_49] : memref<32x96xf32, #tpu.memory_space<vmem>>, vector<4x96xf32>
    %cst_50 = arith.constant dense<0.000000e+00> : vector<4x96xf32>
    %148 = tpu.matmul %143, %14, %cst_50 {dimension_numbers = #tpu.dot_dimension_numbers<[1], [0], [0], [1], [0, 0, 1, 1], [], []>} : vector<4x32xf32>, vector<32x96xf32>, vector<4x96xf32> -> vector<4x96xf32>
    %149 = arith.addf %148, %17 : vector<4x96xf32>
    %150 = vector.extract_strided_slice %147 {offsets = [0, 0], sizes = [4, 32], strides = [1, 1]} : vector<4x96xf32> to vector<4x32xf32>
    %151 = vector.extract_strided_slice %149 {offsets = [0, 0], sizes = [4, 32], strides = [1, 1]} : vector<4x96xf32> to vector<4x32xf32>
    %152 = arith.addf %150, %151 : vector<4x32xf32>
    %153 = arith.negf %152 : vector<4x32xf32>
    %154 = math.exp %153 : vector<4x32xf32>
    %cst_51 = arith.constant 1.000000e+00 : f32
    %155 = vector.broadcast %cst_51 : f32 to vector<4x32xf32>
    %156 = arith.addf %155, %154 : vector<4x32xf32>
    %157 = arith.divf %155, %156 : vector<4x32xf32>
    %158 = vector.extract_strided_slice %147 {offsets = [0, 32], sizes = [4, 32], strides = [1, 1]} : vector<4x96xf32> to vector<4x32xf32>
    %159 = vector.extract_strided_slice %149 {offsets = [0, 32], sizes = [4, 32], strides = [1, 1]} : vector<4x96xf32> to vector<4x32xf32>
    %160 = arith.addf %158, %159 : vector<4x32xf32>
    %161 = arith.negf %160 : vector<4x32xf32>
    %162 = math.exp %161 : vector<4x32xf32>
    %cst_52 = arith.constant 1.000000e+00 : f32
    %163 = vector.broadcast %cst_52 : f32 to vector<4x32xf32>
    %164 = arith.addf %163, %162 : vector<4x32xf32>
    %165 = arith.divf %163, %164 : vector<4x32xf32>
    %166 = vector.extract_strided_slice %147 {offsets = [0, 64], sizes = [4, 32], strides = [1, 1]} : vector<4x96xf32> to vector<4x32xf32>
    %167 = vector.extract_strided_slice %149 {offsets = [0, 64], sizes = [4, 32], strides = [1, 1]} : vector<4x96xf32> to vector<4x32xf32>
    %168 = arith.mulf %157, %167 : vector<4x32xf32>
    %169 = arith.addf %166, %168 : vector<4x32xf32>
    %170 = math.tanh %169 : vector<4x32xf32>
    %cst_53 = arith.constant 1.000000e+00 : f32
    %171 = vector.broadcast %cst_53 : f32 to vector<4x32xf32>
    %172 = arith.subf %171, %165 : vector<4x32xf32>
    %173 = arith.mulf %172, %170 : vector<4x32xf32>
    %174 = arith.mulf %165, %143 : vector<4x32xf32>
    %175 = arith.addf %173, %174 : vector<4x32xf32>
    %c4_54 = arith.constant 4 : index
    %c0_55 = arith.constant 0 : index
    %c0_56 = arith.constant 0 : index
    %176 = vector.load %arg9[%c4_54, %c0_55, %c0_56] : memref<8x4x32xf32, #tpu.memory_space<vmem>>, vector<1x4x32xf32>
    %177 = vector.shape_cast %176 : vector<1x4x32xf32> to vector<4x32xf32>
    %178 = vector.shape_cast %175 : vector<4x32xf32> to vector<1x4x32xf32>
    tpu.vector_store %arg9[%c4_54, %c0_55, %c0_56], %178 {strides = array<i32>} : memref<8x4x32xf32, #tpu.memory_space<vmem>>, vector<1x4x32xf32>,
    %c20 = arith.constant 20 : index
    %c0_57 = arith.constant 0 : index
    %179 = vector.load %arg10[%c20, %c0_57] : memref<32x96xf32, #tpu.memory_space<vmem>>, vector<4x96xf32>
    %cst_58 = arith.constant dense<0.000000e+00> : vector<4x96xf32>
    %180 = tpu.matmul %175, %14, %cst_58 {dimension_numbers = #tpu.dot_dimension_numbers<[1], [0], [0], [1], [0, 0, 1, 1], [], []>} : vector<4x32xf32>, vector<32x96xf32>, vector<4x96xf32> -> vector<4x96xf32>
    %181 = arith.addf %180, %17 : vector<4x96xf32>
    %182 = vector.extract_strided_slice %179 {offsets = [0, 0], sizes = [4, 32], strides = [1, 1]} : vector<4x96xf32> to vector<4x32xf32>
    %183 = vector.extract_strided_slice %181 {offsets = [0, 0], sizes = [4, 32], strides = [1, 1]} : vector<4x96xf32> to vector<4x32xf32>
    %184 = arith.addf %182, %183 : vector<4x32xf32>
    %185 = arith.negf %184 : vector<4x32xf32>
    %186 = math.exp %185 : vector<4x32xf32>
    %cst_59 = arith.constant 1.000000e+00 : f32
    %187 = vector.broadcast %cst_59 : f32 to vector<4x32xf32>
    %188 = arith.addf %187, %186 : vector<4x32xf32>
    %189 = arith.divf %187, %188 : vector<4x32xf32>
    %190 = vector.extract_strided_slice %179 {offsets = [0, 32], sizes = [4, 32], strides = [1, 1]} : vector<4x96xf32> to vector<4x32xf32>
    %191 = vector.extract_strided_slice %181 {offsets = [0, 32], sizes = [4, 32], strides = [1, 1]} : vector<4x96xf32> to vector<4x32xf32>
    %192 = arith.addf %190, %191 : vector<4x32xf32>
    %193 = arith.negf %192 : vector<4x32xf32>
    %194 = math.exp %193 : vector<4x32xf32>
    %cst_60 = arith.constant 1.000000e+00 : f32
    %195 = vector.broadcast %cst_60 : f32 to vector<4x32xf32>
    %196 = arith.addf %195, %194 : vector<4x32xf32>
    %197 = arith.divf %195, %196 : vector<4x32xf32>
    %198 = vector.extract_strided_slice %179 {offsets = [0, 64], sizes = [4, 32], strides = [1, 1]} : vector<4x96xf32> to vector<4x32xf32>
    %199 = vector.extract_strided_slice %181 {offsets = [0, 64], sizes = [4, 32], strides = [1, 1]} : vector<4x96xf32> to vector<4x32xf32>
    %200 = arith.mulf %189, %199 : vector<4x32xf32>
    %201 = arith.addf %198, %200 : vector<4x32xf32>
    %202 = math.tanh %201 : vector<4x32xf32>
    %cst_61 = arith.constant 1.000000e+00 : f32
    %203 = vector.broadcast %cst_61 : f32 to vector<4x32xf32>
    %204 = arith.subf %203, %197 : vector<4x32xf32>
    %205 = arith.mulf %204, %202 : vector<4x32xf32>
    %206 = arith.mulf %197, %175 : vector<4x32xf32>
    %207 = arith.addf %205, %206 : vector<4x32xf32>
    %c5 = arith.constant 5 : index
    %c0_62 = arith.constant 0 : index
    %c0_63 = arith.constant 0 : index
    %208 = vector.load %arg9[%c5, %c0_62, %c0_63] : memref<8x4x32xf32, #tpu.memory_space<vmem>>, vector<1x4x32xf32>
    %209 = vector.shape_cast %208 : vector<1x4x32xf32> to vector<4x32xf32>
    %210 = vector.shape_cast %207 : vector<4x32xf32> to vector<1x4x32xf32>
    tpu.vector_store %arg9[%c5, %c0_62, %c0_63], %210 {strides = array<i32>} : memref<8x4x32xf32, #tpu.memory_space<vmem>>, vector<1x4x32xf32>,
    %c24 = arith.constant 24 : index
    %c0_64 = arith.constant 0 : index
    %211 = vector.load %arg10[%c24, %c0_64] : memref<32x96xf32, #tpu.memory_space<vmem>>, vector<4x96xf32>
    %cst_65 = arith.constant dense<0.000000e+00> : vector<4x96xf32>
    %212 = tpu.matmul %207, %14, %cst_65 {dimension_numbers = #tpu.dot_dimension_numbers<[1], [0], [0], [1], [0, 0, 1, 1], [], []>} : vector<4x32xf32>, vector<32x96xf32>, vector<4x96xf32> -> vector<4x96xf32>
    %213 = arith.addf %212, %17 : vector<4x96xf32>
    %214 = vector.extract_strided_slice %211 {offsets = [0, 0], sizes = [4, 32], strides = [1, 1]} : vector<4x96xf32> to vector<4x32xf32>
    %215 = vector.extract_strided_slice %213 {offsets = [0, 0], sizes = [4, 32], strides = [1, 1]} : vector<4x96xf32> to vector<4x32xf32>
    %216 = arith.addf %214, %215 : vector<4x32xf32>
    %217 = arith.negf %216 : vector<4x32xf32>
    %218 = math.exp %217 : vector<4x32xf32>
    %cst_66 = arith.constant 1.000000e+00 : f32
    %219 = vector.broadcast %cst_66 : f32 to vector<4x32xf32>
    %220 = arith.addf %219, %218 : vector<4x32xf32>
    %221 = arith.divf %219, %220 : vector<4x32xf32>
    %222 = vector.extract_strided_slice %211 {offsets = [0, 32], sizes = [4, 32], strides = [1, 1]} : vector<4x96xf32> to vector<4x32xf32>
    %223 = vector.extract_strided_slice %213 {offsets = [0, 32], sizes = [4, 32], strides = [1, 1]} : vector<4x96xf32> to vector<4x32xf32>
    %224 = arith.addf %222, %223 : vector<4x32xf32>
    %225 = arith.negf %224 : vector<4x32xf32>
    %226 = math.exp %225 : vector<4x32xf32>
    %cst_67 = arith.constant 1.000000e+00 : f32
    %227 = vector.broadcast %cst_67 : f32 to vector<4x32xf32>
    %228 = arith.addf %227, %226 : vector<4x32xf32>
    %229 = arith.divf %227, %228 : vector<4x32xf32>
    %230 = vector.extract_strided_slice %211 {offsets = [0, 64], sizes = [4, 32], strides = [1, 1]} : vector<4x96xf32> to vector<4x32xf32>
    %231 = vector.extract_strided_slice %213 {offsets = [0, 64], sizes = [4, 32], strides = [1, 1]} : vector<4x96xf32> to vector<4x32xf32>
    %232 = arith.mulf %221, %231 : vector<4x32xf32>
    %233 = arith.addf %230, %232 : vector<4x32xf32>
    %234 = math.tanh %233 : vector<4x32xf32>
    %cst_68 = arith.constant 1.000000e+00 : f32
    %235 = vector.broadcast %cst_68 : f32 to vector<4x32xf32>
    %236 = arith.subf %235, %229 : vector<4x32xf32>
    %237 = arith.mulf %236, %234 : vector<4x32xf32>
    %238 = arith.mulf %229, %207 : vector<4x32xf32>
    %239 = arith.addf %237, %238 : vector<4x32xf32>
    %c6 = arith.constant 6 : index
    %c0_69 = arith.constant 0 : index
    %c0_70 = arith.constant 0 : index
    %240 = vector.load %arg9[%c6, %c0_69, %c0_70] : memref<8x4x32xf32, #tpu.memory_space<vmem>>, vector<1x4x32xf32>
    %241 = vector.shape_cast %240 : vector<1x4x32xf32> to vector<4x32xf32>
    %242 = vector.shape_cast %239 : vector<4x32xf32> to vector<1x4x32xf32>
    tpu.vector_store %arg9[%c6, %c0_69, %c0_70], %242 {strides = array<i32>} : memref<8x4x32xf32, #tpu.memory_space<vmem>>, vector<1x4x32xf32>,
    %c28 = arith.constant 28 : index
    %c0_71 = arith.constant 0 : index
    %243 = vector.load %arg10[%c28, %c0_71] : memref<32x96xf32, #tpu.memory_space<vmem>>, vector<4x96xf32>
    %cst_72 = arith.constant dense<0.000000e+00> : vector<4x96xf32>
    %244 = tpu.matmul %239, %14, %cst_72 {dimension_numbers = #tpu.dot_dimension_numbers<[1], [0], [0], [1], [0, 0, 1, 1], [], []>} : vector<4x32xf32>, vector<32x96xf32>, vector<4x96xf32> -> vector<4x96xf32>
    %245 = arith.addf %244, %17 : vector<4x96xf32>
    %246 = vector.extract_strided_slice %243 {offsets = [0, 0], sizes = [4, 32], strides = [1, 1]} : vector<4x96xf32> to vector<4x32xf32>
    %247 = vector.extract_strided_slice %245 {offsets = [0, 0], sizes = [4, 32], strides = [1, 1]} : vector<4x96xf32> to vector<4x32xf32>
    %248 = arith.addf %246, %247 : vector<4x32xf32>
    %249 = arith.negf %248 : vector<4x32xf32>
    %250 = math.exp %249 : vector<4x32xf32>
    %cst_73 = arith.constant 1.000000e+00 : f32
    %251 = vector.broadcast %cst_73 : f32 to vector<4x32xf32>
    %252 = arith.addf %251, %250 : vector<4x32xf32>
    %253 = arith.divf %251, %252 : vector<4x32xf32>
    %254 = vector.extract_strided_slice %243 {offsets = [0, 32], sizes = [4, 32], strides = [1, 1]} : vector<4x96xf32> to vector<4x32xf32>
    %255 = vector.extract_strided_slice %245 {offsets = [0, 32], sizes = [4, 32], strides = [1, 1]} : vector<4x96xf32> to vector<4x32xf32>
    %256 = arith.addf %254, %255 : vector<4x32xf32>
    %257 = arith.negf %256 : vector<4x32xf32>
    %258 = math.exp %257 : vector<4x32xf32>
    %cst_74 = arith.constant 1.000000e+00 : f32
    %259 = vector.broadcast %cst_74 : f32 to vector<4x32xf32>
    %260 = arith.addf %259, %258 : vector<4x32xf32>
    %261 = arith.divf %259, %260 : vector<4x32xf32>
    %262 = vector.extract_strided_slice %243 {offsets = [0, 64], sizes = [4, 32], strides = [1, 1]} : vector<4x96xf32> to vector<4x32xf32>
    %263 = vector.extract_strided_slice %245 {offsets = [0, 64], sizes = [4, 32], strides = [1, 1]} : vector<4x96xf32> to vector<4x32xf32>
    %264 = arith.mulf %253, %263 : vector<4x32xf32>
    %265 = arith.addf %262, %264 : vector<4x32xf32>
    %266 = math.tanh %265 : vector<4x32xf32>
    %cst_75 = arith.constant 1.000000e+00 : f32
    %267 = vector.broadcast %cst_75 : f32 to vector<4x32xf32>
    %268 = arith.subf %267, %261 : vector<4x32xf32>
    %269 = arith.mulf %268, %266 : vector<4x32xf32>
    %270 = arith.mulf %261, %239 : vector<4x32xf32>
    %271 = arith.addf %269, %270 : vector<4x32xf32>
    %c7 = arith.constant 7 : index
    %c0_76 = arith.constant 0 : index
    %c0_77 = arith.constant 0 : index
    %272 = vector.load %arg9[%c7, %c0_76, %c0_77] : memref<8x4x32xf32, #tpu.memory_space<vmem>>, vector<1x4x32xf32>
    %273 = vector.shape_cast %272 : vector<1x4x32xf32> to vector<4x32xf32>
    %274 = vector.shape_cast %271 : vector<4x32xf32> to vector<1x4x32xf32>
    tpu.vector_store %arg9[%c7, %c0_76, %c0_77], %274 {strides = array<i32>} : memref<8x4x32xf32, #tpu.memory_space<vmem>>, vector<1x4x32xf32>,
    return
  }
  func.func @transform_0(%arg0: i32) -> (i32, i32) {
    %c0_i32 = arith.constant 0 : i32
    %c0_i32_0 = arith.constant 0 : i32
    %c0_i32_1 = arith.constant 0 : i32
    return %c0_i32, %c0_i32_0 : i32, i32
  }
  func.func @transform_1(%arg0: i32) -> (i32, i32) {
    %c0_i32 = arith.constant 0 : i32
    %c0_i32_0 = arith.constant 0 : i32
    %c0_i32_1 = arith.constant 0 : i32
    return %c0_i32, %c0_i32_0 : i32, i32
  }
  func.func @transform_2(%arg0: i32) -> (i32, i32) {
    %c0_i32 = arith.constant 0 : i32
    %c0_i32_0 = arith.constant 0 : i32
    %c0_i32_1 = arith.constant 0 : i32
    return %c0_i32, %c0_i32_0 : i32, i32
  }
  func.func @transform_3(%arg0: i32) -> (i32, i32) {
    %c0_i32 = arith.constant 0 : i32
    %c0_i32_0 = arith.constant 0 : i32
    %c0_i32_1 = arith.constant 0 : i32
    return %c0_i32, %c0_i32_0 : i32, i32
  }
  func.func @transform_4(%arg0: i32) -> (i32, i32) {
    %c0_i32 = arith.constant 0 : i32
    %c0_i32_0 = arith.constant 0 : i32
    %c0_i32_1 = arith.constant 0 : i32
    return %c0_i32, %c0_i32_0 : i32, i32
  }
  func.func @transform_5(%arg0: i32) -> (i32, i32) {
    %c0_i32 = arith.constant 0 : i32
    %c0_i32_0 = arith.constant 0 : i32
    %c0_i32_1 = arith.constant 0 : i32
    return %c0_i32, %c0_i32_0 : i32, i32
  }
  func.func @transform_6(%arg0: i32) -> (i32, i32) {
    %c0_i32 = arith.constant 0 : i32
    %c0_i32_0 = arith.constant 0 : i32
    %c0_i32_1 = arith.constant 0 : i32
    return %c0_i32, %c0_i32_0 : i32, i32
  }
  func.func @transform_7(%arg0: i32) -> (i32, i32) {
    %c0_i32 = arith.constant 0 : i32
    %c0_i32_0 = arith.constant 0 : i32
    %c0_i32_1 = arith.constant 0 : i32
    return %c0_i32, %c0_i32_0 : i32, i32
  }
  func.func @transform_8(%arg0: i32) -> (i32, i32, i32) {
    %c0_i32 = arith.constant 0 : i32
    %c0_i32_0 = arith.constant 0 : i32
    %c0_i32_1 = arith.constant 0 : i32
    %c0_i32_2 = arith.constant 0 : i32
    return %c0_i32, %c0_i32_0, %c0_i32_1 : i32, i32, i32
  }
}

</mosaic_0001>

<llo_original>
// kernel: rnn_forward.1
$region0: #{rnn_forward.1}
  #allocation0 [shape = 'u32[]', space=smem, size = 0x4, offset = 0x4, fixed_abs, tag = 'smem constant byte address 0x4 - core index']
  #allocation1 [shape = 'u32[72,128]{1,0:T(1,128)}', space=vmem, size = 0x9000, scoped, tag = 'internal scratch']
  #allocation2 [shape = 'f32[32,96]{1,0:T(8,128)}', space=vmem, size = 0x4000, scoped, tag = 'scratch operand']
  %s0 = inlined_call_operand.hbm [shape: f32[32,16], index: 0, kind: input, shape index: {}]
  %s1 = inlined_call_operand.hbm [shape: f32[16,32], index: 1, kind: input, shape index: {}]
  %s2 = inlined_call_operand.vmem [shape: f32[1,32], index: 2, kind: input, shape index: {}]
  %s3 = inlined_call_operand.hbm [shape: f32[32,96], index: 3, kind: input, shape index: {}]
  %s4 = inlined_call_operand.vmem [shape: f32[1,96], index: 4, kind: input, shape index: {}]
  %s5 = inlined_call_operand.hbm [shape: f32[4,32], index: 5, kind: input, shape index: {}]
  %s6 = inlined_call_operand.hbm [shape: f32[32,96], index: 6, kind: input, shape index: {}]
  %s7 = inlined_call_operand.vmem [shape: f32[1,96], index: 7, kind: input, shape index: {}]
  %s8 = inlined_call_operand.vmem [shape: f32[8,4,32], index: 8, kind: output, shape index: {}]
  %s9 = sld [smem:[#allocation0]]
  $region62: #{rnn_forward.1} parent=0
    _
  %s11 = ssub.s32 1, %s9
  %s12 = scalar_select 0, %s11, %s9
  $region1: #{rnn_forward.1} parent=0
    #allocation3 [shape = 'u8[16384]{0}', space=vmem, size = 0x4000, scoped, tag = 'input window, operand 0, single buffered']
    #allocation4 [shape = 's32[1]{0}', space=sflag, size = 0x4, scoped, tag = 'scoped memory for rnn_forward.1']
    #allocation5 [shape = 'u8[8192]{0}', space=vmem, size = 0x2000, scoped, tag = 'input window, operand 1, single buffered']
    #allocation6 [shape = 's32[1]{0}', space=sflag, size = 0x4, scoped, tag = 'scoped memory for rnn_forward.1']
    #allocation7 [shape = 'u8[16384]{0}', space=vmem, size = 0x4000, scoped, tag = 'input window, operand 3, single buffered']
    #allocation8 [shape = 'u8[2048]{0}', space=vmem, size = 0x800, scoped, tag = 'input window, operand 5, single buffered']
    #allocation9 [shape = 's32[1]{0}', space=sflag, size = 0x4, scoped, tag = 'scoped memory for rnn_forward.1']
    #allocation10 [shape = 'u8[16384]{0}', space=vmem, size = 0x4000, scoped, tag = 'input window, operand 6, single buffered']
    %13 = vsyncpa [#allocation4], 0
    %14 = vsyncpa [#allocation6], 0
    %15 = vsyncpa [#allocation9], 0
    // Predicated region
    $region2: #{rnn_forward.1} parent=1 // pred_check
      _
    $region3: #{rnn_forward.1} parent=1 // pred_check_branch
      %17 = sbr.rel (0) target = $region5
    $region4: #{rnn_forward.1} parent=1 // pred_region
      %19 = vsyncadd [#allocation4], 0
      %s20 = sshll.u32 %s0, 4
      %s21 = int_to_ptr.hbm [resolvable:$true] %s20
      %s22 = sshll.u32 [#allocation3], 4
      %s23 = int_to_ptr.vmem [resolvable:$true] %s22
      %28 = dma.hbm_to_vmem [thread:$0]  %s21, 512, %s23, [#allocation4], 128, 128, 8
    $region5: #{rnn_forward.1} parent=1 // pred_fallthru
      _
    // Predicated region
    $region6: #{rnn_forward.1} parent=1 // pred_check
      _
    $region7: #{rnn_forward.1} parent=1 // pred_check_branch
      %30 = sbr.rel (0) target = $region9
    $region8: #{rnn_forward.1} parent=1 // pred_region
      %32 = vsyncadd [#allocation6], 0
      %s33 = sshll.u32 %s1, 4
      %s34 = int_to_ptr.hbm [resolvable:$true] %s33
      %s35 = sshll.u32 [#allocation5], 4
      %s36 = int_to_ptr.vmem [resolvable:$true] %s35
      %41 = dma.hbm_to_vmem [thread:$0]  %s34, 256, %s36, [#allocation6], 128, 128, 8
    $region9: #{rnn_forward.1} parent=1 // pred_fallthru
      _
    // Predicated region
    $region10: #{rnn_forward.1} parent=1 // pred_check
      _
    $region11: #{rnn_forward.1} parent=1 // pred_check_branch
      %43 = sbr.rel (0) target = $region13
    $region12: #{rnn_forward.1} parent=1 // pred_region
      _
    $region13: #{rnn_forward.1} parent=1 // pred_fallthru
      _
    // Predicated region
    $region14: #{rnn_forward.1} parent=1 // pred_check
      _
    $region15: #{rnn_forward.1} parent=1 // pred_check_branch
      %45 = sbr.rel (0) target = $region17
    $region16: #{rnn_forward.1} parent=1 // pred_region
      %47 = vsyncadd [#allocation6], 0
      %s48 = sshll.u32 %s3, 4
      %s49 = int_to_ptr.hbm [resolvable:$true] %s48
      %s50 = sshll.u32 [#allocation7], 4
      %s51 = int_to_ptr.vmem [resolvable:$true] %s50
      %56 = dma.hbm_to_vmem [thread:$0]  %s49, 512, %s51, [#allocation6], 128, 128, 8
    $region17: #{rnn_forward.1} parent=1 // pred_fallthru
      _
    // Predicated region
    $region18: #{rnn_forward.1} parent=1 // pred_check
      _
    $region19: #{rnn_forward.1} parent=1 // pred_check_branch
      %58 = sbr.rel (0) target = $region21
    $region20: #{rnn_forward.1} parent=1 // pred_region
      _
    $region21: #{rnn_forward.1} parent=1 // pred_fallthru
      _
    // Predicated region
    $region22: #{rnn_forward.1} parent=1 // pred_check
      _
    $region23: #{rnn_forward.1} parent=1 // pred_check_branch
      %60 = sbr.rel (0) target = $region25
    $region24: #{rnn_forward.1} parent=1 // pred_region
      %62 = vsyncadd [#allocation9], 0
      %s64 = sshll.u32 %s5, 4
      %s65 = int_to_ptr.hbm [resolvable:$true] %s64
      %s66 = sshll.u32 [#allocation8], 4
      %s67 = int_to_ptr.vmem [resolvable:$true] %s66
      %69 = dma.hbm_to_vmem [thread:$0]  %s65, 64, %s67, [#allocation9]
    $region25: #{rnn_forward.1} parent=1 // pred_fallthru
      _
    // Predicated region
    $region26: #{rnn_forward.1} parent=1 // pred_check
      _
    $region27: #{rnn_forward.1} parent=1 // pred_check_branch
      %71 = sbr.rel (0) target = $region29
    $region28: #{rnn_forward.1} parent=1 // pred_region
      %73 = vsyncadd [#allocation9], 0
      %s74 = sshll.u32 %s6, 4
      %s75 = int_to_ptr.hbm [resolvable:$true] %s74
      %s76 = sshll.u32 [#allocation10], 4
      %s77 = int_to_ptr.vmem [resolvable:$true] %s76
      %82 = dma.hbm_to_vmem [thread:$0]  %s75, 512, %s77, [#allocation9], 128, 128, 8
    $region29: #{rnn_forward.1} parent=1 // pred_fallthru
      _
    // Predicated region
    $region30: #{rnn_forward.1} parent=1 // pred_check
      _
    $region31: #{rnn_forward.1} parent=1 // pred_check_branch
      %84 = sbr.rel (0) target = $region33
    $region32: #{rnn_forward.1} parent=1 // pred_region
      _
    $region33: #{rnn_forward.1} parent=1 // pred_fallthru
      _
    // Predicated region
    $region34: #{rnn_forward.1} parent=1 // pred_check
      _
    $region35: #{rnn_forward.1} parent=1 // pred_check_branch
      %86 = sbr.rel (0) target = $region37
    $region36: #{rnn_forward.1} parent=1 // pred_region
      %88 = dma.done [#allocation4], 512
    $region37: #{rnn_forward.1} parent=1 // pred_fallthru
      _
    // Predicated region
    $region38: #{rnn_forward.1} parent=1 // pred_check
      _
    $region39: #{rnn_forward.1} parent=1 // pred_check_branch
      %90 = sbr.rel (0) target = $region41
    $region40: #{rnn_forward.1} parent=1 // pred_region
      %92 = dma.done [#allocation6], 256
    $region41: #{rnn_forward.1} parent=1 // pred_fallthru
      _
    // Predicated region
    $region42: #{rnn_forward.1} parent=1 // pred_check
      _
    $region43: #{rnn_forward.1} parent=1 // pred_check_branch
      %94 = sbr.rel (0) target = $region45
    $region44: #{rnn_forward.1} parent=1 // pred_region
      %96 = dma.done [#allocation6], 512
    $region45: #{rnn_forward.1} parent=1 // pred_fallthru
      _
    // Predicated region
    $region46: #{rnn_forward.1} parent=1 // pred_check
      _
    $region47: #{rnn_forward.1} parent=1 // pred_check_branch
      %98 = sbr.rel (0) target = $region49
    $region48: #{rnn_forward.1} parent=1 // pred_region
      %100 = dma.done [#allocation9], 64
    $region49: #{rnn_forward.1} parent=1 // pred_fallthru
      _
    // Predicated region
    $region50: #{rnn_forward.1} parent=1 // pred_check
      _
    $region51: #{rnn_forward.1} parent=1 // pred_check_branch
      %102 = sbr.rel (0) target = $region53
    $region52: #{rnn_forward.1} parent=1 // pred_region
      %104 = dma.done [#allocation9], 512
    $region53: #{rnn_forward.1} parent=1 // pred_fallthru
      _
    %v105 = vld [vmem:[#allocation3] sm:$0xff]
    %v106 = vld [vmem:[#allocation3 + $0x8] sm:$0xff]
    %v107 = vld [vmem:[#allocation3 + $0x10] sm:$0xff]
    %v108 = vld [vmem:[#allocation3 + $0x18] sm:$0xff]
    %v109 = vld [vmem:[#allocation5] sm:$0xff]
    %v110 = vld [vmem:[#allocation5 + $0x8] sm:$0xff]
    %v111 = vld [vmem:[%s2] sm:$0x1]
    %v113 = vperm.slane %v111, 0
    %vm115 = vcmask 130048
    %v117 = vsel %vm115, %v105, 0
    %v120 = vsel %vm115, %v106, 0
    %v123 = vsel %vm115, %v107, 0
    %v126 = vsel %vm115, %v108, 0
    %128 = vmatpush.msra.mxu0 0.0
    %129 = vmatpush.msra.mxu0 0.0
    %130 = vmatpush.msra.mxu0 0.0
    %131 = vmatpush.msra.mxu0 0.0
    %132 = vmatpush.msra.mxu0 0.0
    %133 = vmatpush.msra.mxu0 0.0
    %134 = vmatpush.msra.mxu0 0.0
    %135 = vmatpush.msra.mxu0 0.0
    %136 = vmatpush.msra.mxu0 0.0
    %137 = vmatpush.msra.mxu0 0.0
    %138 = vmatpush.msra.mxu0 0.0
    %139 = vmatpush.msra.mxu0 0.0
    %140 = vmatpush.msra.mxu0 0.0
    %141 = vmatpush.msra.mxu0 0.0
    %142 = vmatpush.msra.mxu0 %v110
    %143 = vmatpush.msra.mxu0 %v109
    %144 = vmatmul.f32.gmra.mxu0 %v117
    %v145 = vpop.f32.mrf.mxu0
    %v146 = vadd.f32 %v113, %v145
    %147 = vmatmul.f32.gmra.mxu0 %v120
    %v148 = vpop.f32.mrf.mxu0
    %v149 = vadd.f32 %v113, %v148
    %150 = vmatmul.f32.gmra.mxu0 %v123
    %v151 = vpop.f32.mrf.mxu0
    %v152 = vadd.f32 %v113, %v151
    %153 = vmatmul.f32.gmra.mxu0 %v126
    %v154 = vpop.f32.mrf.mxu0
    %v155 = vadd.f32 %v113, %v154
    %156 = vdwg.mxu0
    %v157 = vmax.f32 %v146, 0.0
    %v158 = vmax.f32 %v149, 0.0
    %v159 = vmax.f32 %v152, 0.0
    %v160 = vmax.f32 %v155, 0.0
    %v161 = vld [vmem:[#allocation7] sm:$0xff]
    %v162 = vld [vmem:[#allocation7 + $0x8] sm:$0xff]
    %v163 = vld [vmem:[#allocation7 + $0x10] sm:$0xff]
    %v164 = vld [vmem:[#allocation7 + $0x18] sm:$0xff]
    %v165 = vld [vmem:[%s4] sm:$0x1]
    %v167 = vperm.slane %v165, 0
    %vm169 = vcmask 261120
    %v171 = vsel %vm169, %v157, 0
    %v174 = vsel %vm169, %v158, 0
    %v177 = vsel %vm169, %v159, 0
    %v180 = vsel %vm169, %v160, 0
    %182 = vmatpush.msra.mxu0 0.0
    %183 = vmatpush.msra.mxu0 0.0
    %184 = vmatpush.msra.mxu0 0.0
    %185 = vmatpush.msra.mxu0 0.0
    %186 = vmatpush.msra.mxu0 0.0
    %187 = vmatpush.msra.mxu0 0.0
    %188 = vmatpush.msra.mxu0 0.0
    %189 = vmatpush.msra.mxu0 0.0
    %190 = vmatpush.msra.mxu0 0.0
    %191 = vmatpush.msra.mxu0 0.0
    %192 = vmatpush.msra.mxu0 0.0
    %193 = vmatpush.msra.mxu0 0.0
    %194 = vmatpush.msra.mxu0 %v164
    %195 = vmatpush.msra.mxu0 %v163
    %196 = vmatpush.msra.mxu0 %v162
    %197 = vmatpush.msra.mxu0 %v161
    %198 = vmatmul.f32.gmra.mxu0 %v171
    %v199 = vpop.f32.mrf.mxu0
    %v200 = vadd.f32 %v167, %v199
    %201 = vmatmul.f32.gmra.mxu0 %v174
    %v202 = vpop.f32.mrf.mxu0
    %v203 = vadd.f32 %v167, %v202
    %204 = vmatmul.f32.gmra.mxu0 %v177
    %v205 = vpop.f32.mrf.mxu0
    %v206 = vadd.f32 %v167, %v205
    %207 = vmatmul.f32.gmra.mxu0 %v180
    %v208 = vpop.f32.mrf.mxu0
    %v209 = vadd.f32 %v167, %v208
    %210 = vdwg.mxu0
    %vm211 = vcmask 785408
    %212 = vst.msk [vmem:[#allocation2] sm:$0xff] %vm211, %v200
    %213 = vst.msk [vmem:[#allocation2 + $0x8] sm:$0xff] %vm211, %v203
    %214 = vst.msk [vmem:[#allocation2 + $0x10] sm:$0xff] %vm211, %v206
    %215 = vst.msk [vmem:[#allocation2 + $0x18] sm:$0xff] %vm211, %v209
    %v216 = vld [vmem:[#allocation10] sm:$0xff]
    %v217 = vld [vmem:[#allocation10 + $0x8] sm:$0xff]
    %v218 = vld [vmem:[#allocation10 + $0x10] sm:$0xff]
    %v219 = vld [vmem:[#allocation10 + $0x18] sm:$0xff]
    %v220 = vld [vmem:[%s7] sm:$0x1]
    %v222 = vperm.slane %v220, 0
    %v224 = vld [vmem:[#allocation8] sm:$0xf]
    %v225 = vld [vmem:[#allocation2] sm:$0xf]
    %v227 = vsel %vm169, %v224, 0
    %229 = vmatpush.msra.mxu0 0.0
    %230 = vmatpush.msra.mxu0 0.0
    %231 = vmatpush.msra.mxu0 0.0
    %232 = vmatpush.msra.mxu0 0.0
    %233 = vmatpush.msra.mxu0 0.0
    %234 = vmatpush.msra.mxu0 0.0
    %235 = vmatpush.msra.mxu0 0.0
    %236 = vmatpush.msra.mxu0 0.0
    %237 = vmatpush.msra.mxu0 0.0
    %238 = vmatpush.msra.mxu0 0.0
    %239 = vmatpush.msra.mxu0 0.0
    %240 = vmatpush.msra.mxu0 0.0
    %241 = vmatpush.msra.mxu0 %v219
    %242 = vmatpush.msra.mxu0 %v218
    %243 = vmatpush.msra.mxu0 %v217
    %244 = vmatpush.msra.mxu0 %v216
    %245 = vmatmul.f32.gmra.mxu0 %v227
    %v246 = vpop.f32.mrf.mxu0
    %v247 = vadd.f32 %v222, %v246
    %248 = vdwg.mxu0
    %v249 = vadd.f32 %v225, %v247
    %v250 = vxor.u32 %v249, 2147483648
    %v251 = vmul.f32 %v250, 1.442695
    %v252 = vpow.pop %v251
    %v253 = vadd.f32 %v252, 1.0
    %v254 = vrcp.pop %v253
    %v255 = vmul.f32 %v253, %v254
    %v256 = vsub.f32 1.0, %v255
    %v257 = vmul.f32 %v254, %v256
    %v258 = vadd.f32 %v254, %v257
    %vm259 = vweird.f32 %v253
    %vm260 = vweird.f32 %v254
    %vm261 = vmor %vm259, %vm260
    %v262 = vsel %vm261, %v254, %v258
    %v263 = vand.u32 2147483647, %v253
    %vm264 = vcmp.eq.f32.partialorder %v263, 8.507059e+37
    %v265 = vand.u32 %v253, 2147483648
    %v266 = vor.u32 1.1754944e-38, %v265
    %v267 = vsel %vm264, %v266, %v262
    %v268 = vmul.f32 1.0, %v267
    %270 = vrot.lane.b32.xlu0 %v247, 64
    %v271 = vpop.permute.xlu0 %270
    %v273 = vmul.f32 %v268, %v271
    %275 = vrot.lane.b32.xlu0 %v273, 64
    %v276 = vpop.permute.xlu0 %275
    %v278 = vadd.f32 %v225, %v276
    %v279 = vtanh.pop %v278
    %v280 = vsub.f32 1.0, %v268
    %282 = vrot.lane.b32.xlu0 %v279, 96
    %v283 = vpop.permute.xlu0 %282
    %v285 = vmul.f32 %v280, %v283
    %286 = vrot.lane.b32.xlu0 %v224, 32
    %v287 = vpop.permute.xlu0 %286
    %v289 = vmul.f32 %v268, %v287
    %v290 = vadd.f32 %v285, %v289
    %292 = vrot.lane.b32.xlu0 %v290, 96
    %v293 = vpop.permute.xlu0 %292
    %vm295 = vcmask 257024
    %296 = vst.msk [vmem:[%s8] sm:$0xf] %vm295, %v293
    %v297 = vld [vmem:[#allocation2 + $0x4] sm:$0xf]
    %v298 = vsel %vm169, %v293, 0
    %300 = vmatpush.msra.mxu0 0.0
    %301 = vmatpush.msra.mxu0 0.0
    %302 = vmatpush.msra.mxu0 0.0
    %303 = vmatpush.msra.mxu0 0.0
    %304 = vmatpush.msra.mxu0 0.0
    %305 = vmatpush.msra.mxu0 0.0
    %306 = vmatpush.msra.mxu0 0.0
    %307 = vmatpush.msra.mxu0 0.0
    %308 = vmatpush.msra.mxu0 0.0
    %309 = vmatpush.msra.mxu0 0.0
    %310 = vmatpush.msra.mxu0 0.0
    %311 = vmatpush.msra.mxu0 0.0
    %312 = vmatpush.msra.mxu0 %v219
    %313 = vmatpush.msra.mxu0 %v218
    %314 = vmatpush.msra.mxu0 %v217
    %315 = vmatpush.msra.mxu0 %v216
    %316 = vmatmul.f32.gmra.mxu0 %v298
    %v317 = vpop.f32.mrf.mxu0
    %v318 = vadd.f32 %v222, %v317
    %319 = vdwg.mxu0
    %v320 = vadd.f32 %v297, %v318
    %v321 = vxor.u32 %v320, 2147483648
    %v322 = vmul.f32 %v321, 1.442695
    %v323 = vpow.pop %v322
    %v324 = vadd.f32 %v323, 1.0
    %v325 = vrcp.pop %v324
    %v326 = vmul.f32 %v324, %v325
    %v327 = vsub.f32 1.0, %v326
    %v328 = vmul.f32 %v325, %v327
    %v329 = vadd.f32 %v325, %v328
    %vm330 = vweird.f32 %v324
    %vm331 = vweird.f32 %v325
    %vm332 = vmor %vm330, %vm331
    %v333 = vsel %vm332, %v325, %v329
    %v334 = vand.u32 2147483647, %v324
    %vm335 = vcmp.eq.f32.partialorder %v334, 8.507059e+37
    %v336 = vand.u32 %v324, 2147483648
    %v337 = vor.u32 1.1754944e-38, %v336
    %v338 = vsel %vm335, %v337, %v333
    %v339 = vmul.f32 1.0, %v338
    %341 = vrot.lane.b32.xlu0 %v318, 64
    %v342 = vpop.permute.xlu0 %341
    %v344 = vmul.f32 %v339, %v342
    %346 = vrot.lane.b32.xlu0 %v344, 64
    %v347 = vpop.permute.xlu0 %346
    %v349 = vadd.f32 %v297, %v347
    %v350 = vtanh.pop %v349
    %v351 = vsub.f32 1.0, %v339
    %353 = vrot.lane.b32.xlu0 %v350, 96
    %v354 = vpop.permute.xlu0 %353
    %v356 = vmul.f32 %v351, %v354
    %v357 = vmul.f32 %v339, %v290
    %v358 = vadd.f32 %v356, %v357
    %360 = vrot.lane.b32.xlu0 %v358, 96
    %v361 = vpop.permute.xlu0 %360
    %s363 = scalar_lea.vmem %s8, 4
    %364 = vst.msk [vmem:[%s363] sm:$0xf] %vm295, %v361
    %v365 = vld [vmem:[#allocation2 + $0x8] sm:$0xf]
    %v366 = vsel %vm169, %v361, 0
    %368 = vmatpush.msra.mxu0 0.0
    %369 = vmatpush.msra.mxu0 0.0
    %370 = vmatpush.msra.mxu0 0.0
    %371 = vmatpush.msra.mxu0 0.0
    %372 = vmatpush.msra.mxu0 0.0
    %373 = vmatpush.msra.mxu0 0.0
    %374 = vmatpush.msra.mxu0 0.0
    %375 = vmatpush.msra.mxu0 0.0
    %376 = vmatpush.msra.mxu0 0.0
    %377 = vmatpush.msra.mxu0 0.0
    %378 = vmatpush.msra.mxu0 0.0
    %379 = vmatpush.msra.mxu0 0.0
    %380 = vmatpush.msra.mxu0 %v219
    %381 = vmatpush.msra.mxu0 %v218
    %382 = vmatpush.msra.mxu0 %v217
    %383 = vmatpush.msra.mxu0 %v216
    %384 = vmatmul.f32.gmra.mxu0 %v366
    %v385 = vpop.f32.mrf.mxu0
    %v386 = vadd.f32 %v222, %v385
    %387 = vdwg.mxu0
    %v388 = vadd.f32 %v365, %v386
    %v389 = vxor.u32 %v388, 2147483648
    %v390 = vmul.f32 %v389, 1.442695
    %v391 = vpow.pop %v390
    %v392 = vadd.f32 %v391, 1.0
    %v393 = vrcp.pop %v392
    %v394 = vmul.f32 %v392, %v393
    %v395 = vsub.f32 1.0, %v394
    %v396 = vmul.f32 %v393, %v395
    %v397 = vadd.f32 %v393, %v396
    %vm398 = vweird.f32 %v392
    %vm399 = vweird.f32 %v393
    %vm400 = vmor %vm398, %vm399
    %v401 = vsel %vm400, %v393, %v397
    %v402 = vand.u32 2147483647, %v392
    %vm403 = vcmp.eq.f32.partialorder %v402, 8.507059e+37
    %v404 = vand.u32 %v392, 2147483648
    %v405 = vor.u32 1.1754944e-38, %v404
    %v406 = vsel %vm403, %v405, %v401
    %v407 = vmul.f32 1.0, %v406
    %409 = vrot.lane.b32.xlu0 %v386, 64
    %v410 = vpop.permute.xlu0 %409
    %v412 = vmul.f32 %v407, %v410
    %414 = vrot.lane.b32.xlu0 %v412, 64
    %v415 = vpop.permute.xlu0 %414
    %v417 = vadd.f32 %v365, %v415
    %v418 = vtanh.pop %v417
    %v419 = vsub.f32 1.0, %v407
    %421 = vrot.lane.b32.xlu0 %v418, 96
    %v422 = vpop.permute.xlu0 %421
    %v424 = vmul.f32 %v419, %v422
    %v425 = vmul.f32 %v407, %v358
    %v426 = vadd.f32 %v424, %v425
    %428 = vrot.lane.b32.xlu0 %v426, 96
    %v429 = vpop.permute.xlu0 %428
    %s431 = scalar_lea.vmem %s8, 8
    %432 = vst.msk [vmem:[%s431] sm:$0xf] %vm295, %v429
    %v433 = vld [vmem:[#allocation2 + $0xc] sm:$0xf]
    %v434 = vsel %vm169, %v429, 0
    %436 = vmatpush.msra.mxu0 0.0
    %437 = vmatpush.msra.mxu0 0.0
    %438 = vmatpush.msra.mxu0 0.0
    %439 = vmatpush.msra.mxu0 0.0
    %440 = vmatpush.msra.mxu0 0.0
    %441 = vmatpush.msra.mxu0 0.0
    %442 = vmatpush.msra.mxu0 0.0
    %443 = vmatpush.msra.mxu0 0.0
    %444 = vmatpush.msra.mxu0 0.0
    %445 = vmatpush.msra.mxu0 0.0
    %446 = vmatpush.msra.mxu0 0.0
    %447 = vmatpush.msra.mxu0 0.0
    %448 = vmatpush.msra.mxu0 %v219
    %449 = vmatpush.msra.mxu0 %v218
    %450 = vmatpush.msra.mxu0 %v217
    %451 = vmatpush.msra.mxu0 %v216
    %452 = vmatmul.f32.gmra.mxu0 %v434
    %v453 = vpop.f32.mrf.mxu0
    %v454 = vadd.f32 %v222, %v453
    %455 = vdwg.mxu0
    %v456 = vadd.f32 %v433, %v454
    %v457 = vxor.u32 %v456, 2147483648
    %v458 = vmul.f32 %v457, 1.442695
    %v459 = vpow.pop %v458
    %v460 = vadd.f32 %v459, 1.0
    %v461 = vrcp.pop %v460
    %v462 = vmul.f32 %v460, %v461
    %v463 = vsub.f32 1.0, %v462
    %v464 = vmul.f32 %v461, %v463
    %v465 = vadd.f32 %v461, %v464
    %vm466 = vweird.f32 %v460
    %vm467 = vweird.f32 %v461
    %vm468 = vmor %vm466, %vm467
    %v469 = vsel %vm468, %v461, %v465
    %v470 = vand.u32 2147483647, %v460
    %vm471 = vcmp.eq.f32.partialorder %v470, 8.507059e+37
    %v472 = vand.u32 %v460, 2147483648
    %v473 = vor.u32 1.1754944e-38, %v472
    %v474 = vsel %vm471, %v473, %v469
    %v475 = vmul.f32 1.0, %v474
    %477 = vrot.lane.b32.xlu0 %v454, 64
    %v478 = vpop.permute.xlu0 %477
    %v480 = vmul.f32 %v475, %v478
    %482 = vrot.lane.b32.xlu0 %v480, 64
    %v483 = vpop.permute.xlu0 %482
    %v485 = vadd.f32 %v433, %v483
    %v486 = vtanh.pop %v485
    %v487 = vsub.f32 1.0, %v475
    %489 = vrot.lane.b32.xlu0 %v486, 96
    %v490 = vpop.permute.xlu0 %489
    %v492 = vmul.f32 %v487, %v490
    %v493 = vmul.f32 %v475, %v426
    %v494 = vadd.f32 %v492, %v493
    %496 = vrot.lane.b32.xlu0 %v494, 96
    %v497 = vpop.permute.xlu0 %496
    %s499 = scalar_lea.vmem %s8, 12
    %500 = vst.msk [vmem:[%s499] sm:$0xf] %vm295, %v497
    %v501 = vld [vmem:[#allocation2 + $0x10] sm:$0xf]
    %v502 = vsel %vm169, %v497, 0
    %504 = vmatpush.msra.mxu0 0.0
    %505 = vmatpush.msra.mxu0 0.0
    %506 = vmatpush.msra.mxu0 0.0
    %507 = vmatpush.msra.mxu0 0.0
    %508 = vmatpush.msra.mxu0 0.0
    %509 = vmatpush.msra.mxu0 0.0
    %510 = vmatpush.msra.mxu0 0.0
    %511 = vmatpush.msra.mxu0 0.0
    %512 = vmatpush.msra.mxu0 0.0
    %513 = vmatpush.msra.mxu0 0.0
    %514 = vmatpush.msra.mxu0 0.0
    %515 = vmatpush.msra.mxu0 0.0
    %516 = vmatpush.msra.mxu0 %v219
    %517 = vmatpush.msra.mxu0 %v218
    %518 = vmatpush.msra.mxu0 %v217
    %519 = vmatpush.msra.mxu0 %v216
    %520 = vmatmul.f32.gmra.mxu0 %v502
    %v521 = vpop.f32.mrf.mxu0
    %v522 = vadd.f32 %v222, %v521
    %523 = vdwg.mxu0
    %v524 = vadd.f32 %v501, %v522
    %v525 = vxor.u32 %v524, 2147483648
    %v526 = vmul.f32 %v525, 1.442695
    %v527 = vpow.pop %v526
    %v528 = vadd.f32 %v527, 1.0
    %v529 = vrcp.pop %v528
    %v530 = vmul.f32 %v528, %v529
    %v531 = vsub.f32 1.0, %v530
    %v532 = vmul.f32 %v529, %v531
    %v533 = vadd.f32 %v529, %v532
    %vm534 = vweird.f32 %v528
    %vm535 = vweird.f32 %v529
    %vm536 = vmor %vm534, %vm535
    %v537 = vsel %vm536, %v529, %v533
    %v538 = vand.u32 2147483647, %v528
    %vm539 = vcmp.eq.f32.partialorder %v538, 8.507059e+37
    %v540 = vand.u32 %v528, 2147483648
    %v541 = vor.u32 1.1754944e-38, %v540
    %v542 = vsel %vm539, %v541, %v537
    %v543 = vmul.f32 1.0, %v542
    %545 = vrot.lane.b32.xlu0 %v522, 64
    %v546 = vpop.permute.xlu0 %545
    %v548 = vmul.f32 %v543, %v546
    %550 = vrot.lane.b32.xlu0 %v548, 64
    %v551 = vpop.permute.xlu0 %550
    %v553 = vadd.f32 %v501, %v551
    %v554 = vtanh.pop %v553
    %v555 = vsub.f32 1.0, %v543
    %557 = vrot.lane.b32.xlu0 %v554, 96
    %v558 = vpop.permute.xlu0 %557
    %v560 = vmul.f32 %v555, %v558
    %v561 = vmul.f32 %v543, %v494
    %v562 = vadd.f32 %v560, %v561
    %564 = vrot.lane.b32.xlu0 %v562, 96
    %v565 = vpop.permute.xlu0 %564
    %s567 = scalar_lea.vmem %s8, 16
    %568 = vst.msk [vmem:[%s567] sm:$0xf] %vm295, %v565
    %v569 = vld [vmem:[#allocation2 + $0x14] sm:$0xf]
    %v570 = vsel %vm169, %v565, 0
    %572 = vmatpush.msra.mxu0 0.0
    %573 = vmatpush.msra.mxu0 0.0
    %574 = vmatpush.msra.mxu0 0.0
    %575 = vmatpush.msra.mxu0 0.0
    %576 = vmatpush.msra.mxu0 0.0
    %577 = vmatpush.msra.mxu0 0.0
    %578 = vmatpush.msra.mxu0 0.0
    %579 = vmatpush.msra.mxu0 0.0
    %580 = vmatpush.msra.mxu0 0.0
    %581 = vmatpush.msra.mxu0 0.0
    %582 = vmatpush.msra.mxu0 0.0
    %583 = vmatpush.msra.mxu0 0.0
    %584 = vmatpush.msra.mxu0 %v219
    %585 = vmatpush.msra.mxu0 %v218
    %586 = vmatpush.msra.mxu0 %v217
    %587 = vmatpush.msra.mxu0 %v216
    %588 = vmatmul.f32.gmra.mxu0 %v570
    %v589 = vpop.f32.mrf.mxu0
    %v590 = vadd.f32 %v222, %v589
    %591 = vdwg.mxu0
    %v592 = vadd.f32 %v569, %v590
    %v593 = vxor.u32 %v592, 2147483648
    %v594 = vmul.f32 %v593, 1.442695
    %v595 = vpow.pop %v594
    %v596 = vadd.f32 %v595, 1.0
    %v597 = vrcp.pop %v596
    %v598 = vmul.f32 %v596, %v597
    %v599 = vsub.f32 1.0, %v598
    %v600 = vmul.f32 %v597, %v599
    %v601 = vadd.f32 %v597, %v600
    %vm602 = vweird.f32 %v596
    %vm603 = vweird.f32 %v597
    %vm604 = vmor %vm602, %vm603
    %v605 = vsel %vm604, %v597, %v601
    %v606 = vand.u32 2147483647, %v596
    %vm607 = vcmp.eq.f32.partialorder %v606, 8.507059e+37
    %v608 = vand.u32 %v596, 2147483648
    %v609 = vor.u32 1.1754944e-38, %v608
    %v610 = vsel %vm607, %v609, %v605
    %v611 = vmul.f32 1.0, %v610
    %613 = vrot.lane.b32.xlu0 %v590, 64
    %v614 = vpop.permute.xlu0 %613
    %v616 = vmul.f32 %v611, %v614
    %618 = vrot.lane.b32.xlu0 %v616, 64
    %v619 = vpop.permute.xlu0 %618
    %v621 = vadd.f32 %v569, %v619
    %v622 = vtanh.pop %v621
    %v623 = vsub.f32 1.0, %v611
    %625 = vrot.lane.b32.xlu0 %v622, 96
    %v626 = vpop.permute.xlu0 %625
    %v628 = vmul.f32 %v623, %v626
    %v629 = vmul.f32 %v611, %v562
    %v630 = vadd.f32 %v628, %v629
    %632 = vrot.lane.b32.xlu0 %v630, 96
    %v633 = vpop.permute.xlu0 %632
    %s635 = scalar_lea.vmem %s8, 20
    %636 = vst.msk [vmem:[%s635] sm:$0xf] %vm295, %v633
    %v637 = vld [vmem:[#allocation2 + $0x18] sm:$0xf]
    %v638 = vsel %vm169, %v633, 0
    %640 = vmatpush.msra.mxu0 0.0
    %641 = vmatpush.msra.mxu0 0.0
    %642 = vmatpush.msra.mxu0 0.0
    %643 = vmatpush.msra.mxu0 0.0
    %644 = vmatpush.msra.mxu0 0.0
    %645 = vmatpush.msra.mxu0 0.0
    %646 = vmatpush.msra.mxu0 0.0
    %647 = vmatpush.msra.mxu0 0.0
    %648 = vmatpush.msra.mxu0 0.0
    %649 = vmatpush.msra.mxu0 0.0
    %650 = vmatpush.msra.mxu0 0.0
    %651 = vmatpush.msra.mxu0 0.0
    %652 = vmatpush.msra.mxu0 %v219
    %653 = vmatpush.msra.mxu0 %v218
    %654 = vmatpush.msra.mxu0 %v217
    %655 = vmatpush.msra.mxu0 %v216
    %656 = vmatmul.f32.gmra.mxu0 %v638
    %v657 = vpop.f32.mrf.mxu0
    %v658 = vadd.f32 %v222, %v657
    %659 = vdwg.mxu0
    %v660 = vadd.f32 %v637, %v658
    %v661 = vxor.u32 %v660, 2147483648
    %v662 = vmul.f32 %v661, 1.442695
    %v663 = vpow.pop %v662
    %v664 = vadd.f32 %v663, 1.0
    %v665 = vrcp.pop %v664
    %v666 = vmul.f32 %v664, %v665
    %v667 = vsub.f32 1.0, %v666
    %v668 = vmul.f32 %v665, %v667
    %v669 = vadd.f32 %v665, %v668
    %vm670 = vweird.f32 %v664
    %vm671 = vweird.f32 %v665
    %vm672 = vmor %vm670, %vm671
    %v673 = vsel %vm672, %v665, %v669
    %v674 = vand.u32 2147483647, %v664
    %vm675 = vcmp.eq.f32.partialorder %v674, 8.507059e+37
    %v676 = vand.u32 %v664, 2147483648
    %v677 = vor.u32 1.1754944e-38, %v676
    %v678 = vsel %vm675, %v677, %v673
    %v679 = vmul.f32 1.0, %v678
    %681 = vrot.lane.b32.xlu0 %v658, 64
    %v682 = vpop.permute.xlu0 %681
    %v684 = vmul.f32 %v679, %v682
    %686 = vrot.lane.b32.xlu0 %v684, 64
    %v687 = vpop.permute.xlu0 %686
    %v689 = vadd.f32 %v637, %v687
    %v690 = vtanh.pop %v689
    %v691 = vsub.f32 1.0, %v679
    %693 = vrot.lane.b32.xlu0 %v690, 96
    %v694 = vpop.permute.xlu0 %693
    %v696 = vmul.f32 %v691, %v694
    %v697 = vmul.f32 %v679, %v630
    %v698 = vadd.f32 %v696, %v697
    %700 = vrot.lane.b32.xlu0 %v698, 96
    %v701 = vpop.permute.xlu0 %700
    %s703 = scalar_lea.vmem %s8, 24
    %704 = vst.msk [vmem:[%s703] sm:$0xf] %vm295, %v701
    %v705 = vld [vmem:[#allocation2 + $0x1c] sm:$0xf]
    %v706 = vsel %vm169, %v701, 0
    %708 = vmatpush.msra.mxu0 0.0
    %709 = vmatpush.msra.mxu0 0.0
    %710 = vmatpush.msra.mxu0 0.0
    %711 = vmatpush.msra.mxu0 0.0
    %712 = vmatpush.msra.mxu0 0.0
    %713 = vmatpush.msra.mxu0 0.0
    %714 = vmatpush.msra.mxu0 0.0
    %715 = vmatpush.msra.mxu0 0.0
    %716 = vmatpush.msra.mxu0 0.0
    %717 = vmatpush.msra.mxu0 0.0
    %718 = vmatpush.msra.mxu0 0.0
    %719 = vmatpush.msra.mxu0 0.0
    %720 = vmatpush.msra.mxu0 %v219
    %721 = vmatpush.msra.mxu0 %v218
    %722 = vmatpush.msra.mxu0 %v217
    %723 = vmatpush.msra.mxu0 %v216
    %724 = vmatmul.f32.gmra.mxu0 %v706
    %v725 = vpop.f32.mrf.mxu0
    %v726 = vadd.f32 %v222, %v725
    %727 = vdwg.mxu0
    %v728 = vadd.f32 %v705, %v726
    %v729 = vxor.u32 %v728, 2147483648
    %v730 = vmul.f32 %v729, 1.442695
    %v731 = vpow.pop %v730
    %v732 = vadd.f32 %v731, 1.0
    %v733 = vrcp.pop %v732
    %v734 = vmul.f32 %v732, %v733
    %v735 = vsub.f32 1.0, %v734
    %v736 = vmul.f32 %v733, %v735
    %v737 = vadd.f32 %v733, %v736
    %vm738 = vweird.f32 %v732
    %vm739 = vweird.f32 %v733
    %vm740 = vmor %vm738, %vm739
    %v741 = vsel %vm740, %v733, %v737
    %v742 = vand.u32 2147483647, %v732
    %vm743 = vcmp.eq.f32.partialorder %v742, 8.507059e+37
    %v744 = vand.u32 %v732, 2147483648
    %v745 = vor.u32 1.1754944e-38, %v744
    %v746 = vsel %vm743, %v745, %v741
    %v747 = vmul.f32 1.0, %v746
    %749 = vrot.lane.b32.xlu0 %v726, 64
    %v750 = vpop.permute.xlu0 %749
    %v752 = vmul.f32 %v747, %v750
    %754 = vrot.lane.b32.xlu0 %v752, 64
    %v755 = vpop.permute.xlu0 %754
    %v757 = vadd.f32 %v705, %v755
    %v758 = vtanh.pop %v757
    %v759 = vsub.f32 1.0, %v747
    %761 = vrot.lane.b32.xlu0 %v758, 96
    %v762 = vpop.permute.xlu0 %761
    %v764 = vmul.f32 %v759, %v762
    %v765 = vmul.f32 %v747, %v698
    %v766 = vadd.f32 %v764, %v765
    %768 = vrot.lane.b32.xlu0 %v766, 96
    %v769 = vpop.permute.xlu0 %768
    %s771 = scalar_lea.vmem %s8, 28
    %772 = vst.msk [vmem:[%s771] sm:$0xf] %vm295, %v769
    // Predicated region
    $region54: #{rnn_forward.1} parent=1 // pred_check
      _
    $region55: #{rnn_forward.1} parent=1 // pred_check_branch
      %774 = sbr.rel (0) target = $region57
    $region56: #{rnn_forward.1} parent=1 // pred_region
      _
    $region57: #{rnn_forward.1} parent=1 // pred_fallthru
      _
    // Predicated region
    $region58: #{rnn_forward.1} parent=1 // pred_check
      _
    $region59: #{rnn_forward.1} parent=1 // pred_check_branch
      %776 = sbr.rel (0) target = $region61
    $region60: #{rnn_forward.1} parent=1 // pred_region
      _
    $region61: #{rnn_forward.1} parent=1 // pred_fallthru
      _
    %777 = vsyncpa [#allocation4], 1
    %778 = vsyncpa [#allocation6], 1
    %779 = vsyncpa [#allocation9], 1

</llo_original>
